<compile_context>
chip_gen: v7x
topology: tpu7x:2x2x1
jax: 0.10.0
libtpu: 0.0.40
codegen_flags: <defaults>
</compile_context>

<pallas_src>
import numpy as np
import jax
import jax.numpy as jnp
from jax.experimental import pallas as pl
from jax.experimental.pallas import tpu as pltpu


# ----------------------------- host constants ------------------------------

def _bilinear_matrix_np(out_size: int, in_size: int) -> np.ndarray:
    """Interpolation matrix R (out_size, in_size) for align_corners=True."""
    if out_size == 1 or in_size == 1:
        src = np.zeros((out_size,), dtype=np.float64)
    else:
        src = np.arange(out_size, dtype=np.float64) * (in_size - 1) / (out_size - 1)
    i0 = np.clip(np.floor(src).astype(np.int64), 0, in_size - 1)
    i1 = np.clip(i0 + 1, 0, in_size - 1)
    w1 = src - i0
    w0 = 1.0 - w1
    R = np.zeros((out_size, in_size), dtype=np.float64)
    R[np.arange(out_size), i0] += w0
    R[np.arange(out_size), i1] += w1
    return R.astype(np.float32)


def _reference_bilinear_np(x: np.ndarray, out_h: int, out_w: int) -> np.ndarray:
    """Independent numpy reference (gather + lerp), align_corners=True."""
    N, C, H, W = x.shape

    def coords(o, i):
        if o == 1 or i == 1:
            return np.zeros((o,), dtype=np.float64)
        return np.arange(o, dtype=np.float64) * (i - 1) / (o - 1)

    sy, sx = coords(out_h, H), coords(out_w, W)
    y0 = np.clip(np.floor(sy).astype(np.int64), 0, H - 1)
    y1 = np.clip(y0 + 1, 0, H - 1)
    x0 = np.clip(np.floor(sx).astype(np.int64), 0, W - 1)
    x1 = np.clip(x0 + 1, 0, W - 1)
    wy = (sy - y0)[None, None, :, None]
    wx = (sx - x0)[None, None, None, :]
    v00 = x[:, :, y0][:, :, :, x0]
    v01 = x[:, :, y0][:, :, :, x1]
    v10 = x[:, :, y1][:, :, :, x0]
    v11 = x[:, :, y1][:, :, :, x1]
    top = v00 * (1.0 - wx) + v01 * wx
    bot = v10 * (1.0 - wx) + v11 * wx
    return (top * (1.0 - wy) + bot * wy).astype(np.float32)


# --------------------------------- kernel -----------------------------------

def _resize_kernel(x_ref, w_ref, o_ref):
    # x_ref: (bc, H*W)   w_ref: (H*W, out_h*out_w)   o_ref: (bc, out_h*out_w)
    w = w_ref[...]
    x = x_ref[...].astype(w.dtype)      # no-op in the default f32 path
    o_ref[...] = jnp.dot(x, w, preferred_element_type=jnp.float32).astype(o_ref.dtype)


# ------------------------------ tile selection -------------------------------

def _choose_row_tile(NC, HW, OHW, tile_cap=4096, itemsize=4, vmem_budget=26 << 20):
    """Pick the row-tile size bc (multiple of 8, or == NC for a single block)."""
    per_row = 2 * itemsize * (HW + OHW)        # double-buffered x-row + out-row
    fixed = 2 * itemsize * HW * OHW            # double-buffered resident weight
    cap = min(int(tile_cap), max(8, (vmem_budget - fixed) // per_row))
    cap = max(8, (cap // 8) * 8)               # sublane-aligned

    # Small problems: one full block (block dim == array dim -> no alignment
    # requirement, and splitting across cores would not pay for itself).
    if NC <= 256 and NC <= cap:
        return NC

    # Want >= 2 grid steps (keeps both v7x TensorCores busy) and tiles <= cap.
    min_steps = max(2, pl.cdiv(NC, cap))

    # Prefer an exact multiple-of-8 divisor of NC (no masked tail block),
    # as long as it does not explode the number of grid steps.
    max_bc = min(cap, NC // min_steps)
    for bc in range((max_bc // 8) * 8, 0, -8):
        if NC % bc == 0 and pl.cdiv(NC, bc) <= 4 * min_steps:
            return bc

    # Fall back to a near-balanced tile; the ragged last block is handled by
    # Pallas' masked boundary block (no host-side pad/slice HBM round trip).
    return min(cap, pl.cdiv(pl.cdiv(NC, min_steps), 8) * 8)


# -------------------------------- wrapper ------------------------------------

def upsample_bilinear_align_corners(x: jnp.ndarray,
                                    out_h: int = 32,
                                    out_w: int = 18,
                                    *,
                                    tile_nc: int = 4096,
                                    use_bf16: bool = False) -> jnp.ndarray:
    """x: (N, C, H, W) float32 -> (N, C, out_h, out_w) float32."""
    N, C, H, W = x.shape
    NC, HW, OHW = N * C, H * W, out_h * out_w

    # Host-side (numpy) constant weight: Wmat[h*W+w, o*out_w+p] = Rh[o,h]*Rw[p,w]
    Rh = _bilinear_matrix_np(out_h, H)                     # (out_h, H)
    Rw = _bilinear_matrix_np(out_w, W)                     # (out_w, W)
    Wmat_np = np.einsum("oh,pw->hwop", Rh, Rw).reshape(HW, OHW)
    wdtype = jnp.bfloat16 if use_bf16 else x.dtype
    Wmat = jnp.asarray(Wmat_np, dtype=wdtype)

    # Each (n, c) slice is one contiguous HW-wide row.
    x_flat = x.reshape(NC, HW)

    bc = _choose_row_tile(NC, HW, OHW, tile_cap=tile_nc)
    grid = (pl.cdiv(NC, bc),)

    # Double-buffered VMEM footprint; only raise the scoped-VMEM limit when the
    # default (16 MiB on v5e) would be too small.
    vmem_need = 2 * 4 * (bc * (HW + OHW) + HW * OHW)
    vmem_limit = vmem_need + (4 << 20) if vmem_need > (12 << 20) else None

    out_flat = pl.pallas_call(
        _resize_kernel,
        out_shape=jax.ShapeDtypeStruct((NC, OHW), x.dtype),
        grid_spec=pltpu.PrefetchScalarGridSpec(
            num_scalar_prefetch=0,
            grid=grid,
            in_specs=[
                pl.BlockSpec((bc, HW), lambda i: (i, 0)),
                pl.BlockSpec((HW, OHW), lambda i: (0, 0)),   # resident weight
            ],
            out_specs=pl.BlockSpec((bc, OHW), lambda i: (i, 0)),
        ),
        compiler_params=pltpu.CompilerParams(
            dimension_semantics=("parallel",),
            vmem_limit_bytes=vmem_limit,
        ),
        cost_estimate=pl.CostEstimate(
            flops=2 * NC * HW * OHW,
            transcendentals=0,
            bytes_accessed=4 * (NC * HW + HW * OHW + NC * OHW),
        ),
    )(x_flat, Wmat)

    return out_flat.reshape(N, C, out_h, out_w)


# ---------------------------------- test -------------------------------------

if __name__ == "__main__":
    key = jax.random.PRNGKey(0)

    # Case 1: small NCHW input (matches module usage), single-block path.
    x = jax.random.normal(key, (2, 4, 16, 9), dtype=jnp.float32)
    out = upsample_bilinear_align_corners(x, 32, 18)
    out = jax.block_until_ready(out)
    ref = _reference_bilinear_np(np.asarray(x), 32, 18)
    assert out.shape == (2, 4, 32, 18)
    assert out.dtype == jnp.float32
    assert float(np.max(np.abs(np.asarray(out) - ref))) < 1e-4

    # Case 2: larger N*C (=512) -> multi-step grid (2 x 256 rows), exercising
    # the megacore-friendly tiling path.
    key2 = jax.random.PRNGKey(0)
    x2 = jax.random.normal(key2, (8, 64, 16, 9), dtype=jnp.float32)
    out2 = upsample_bilinear_align_corners(x2, 32, 18)
    out2 = jax.block_until_ready(out2)
    ref2 = _reference_bilinear_np(np.asarray(x2), 32, 18)
    assert out2.shape == (8, 64, 32, 18)
    assert float(np.max(np.abs(np.asarray(out2) - ref2))) < 1e-4

    print("KERNEL_OK")
</pallas_src>

<mosaic_0001>
module attributes {stable_mosaic.version = 11 : i64} {
  func.func @_resize_kernel(%arg0: i32, %arg1: memref<8x144xf32, #tpu.memory_space<vmem>>, %arg2: memref<144x576xf32, #tpu.memory_space<vmem>>, %arg3: memref<8x576xf32, #tpu.memory_space<vmem>>) attributes {dimension_semantics = [#tpu.dimension_semantics<parallel>], iteration_bounds = array<i64: 1>, scalar_prefetch = 0 : i64, scratch_operands = 0 : i64, tpu.core_type = #tpu.core_type<tc>, window_params = [{transform_indices = @transform_0, window_bounds = array<i64: 8, 144>}, {pipeline_mode = #tpu.pipeline_mode<synchronous>, transform_indices = @transform_1, window_bounds = array<i64: 144, 576>}, {transform_indices = @transform_2, window_bounds = array<i64: 8, 576>}]} {
    %c0 = arith.constant 0 : index
    %c0_0 = arith.constant 0 : index
    %0 = vector.load %arg2[%c0, %c0_0] : memref<144x576xf32, #tpu.memory_space<vmem>>, vector<144x576xf32>
    %c0_1 = arith.constant 0 : index
    %c0_2 = arith.constant 0 : index
    %1 = vector.load %arg1[%c0_1, %c0_2] : memref<8x144xf32, #tpu.memory_space<vmem>>, vector<8x144xf32>
    %cst = arith.constant dense<0.000000e+00> : vector<8x576xf32>
    %2 = tpu.matmul %1, %0, %cst {dimension_numbers = #tpu.dot_dimension_numbers<[1], [0], [0], [1], [0, 0, 1, 1], [], []>} : vector<8x144xf32>, vector<144x576xf32>, vector<8x576xf32> -> vector<8x576xf32>
    %c0_3 = arith.constant 0 : index
    %c0_4 = arith.constant 0 : index
    %3 = vector.load %arg3[%c0_3, %c0_4] : memref<8x576xf32, #tpu.memory_space<vmem>>, vector<8x576xf32>
    tpu.vector_store %arg3[%c0_3, %c0_4], %2 {strides = array<i32>} : memref<8x576xf32, #tpu.memory_space<vmem>>, vector<8x576xf32>,
    return
  }
  func.func @transform_0(%arg0: i32) -> (i32, i32) {
    %c0_i32 = arith.constant 0 : i32
    %c0_i32_0 = arith.constant 0 : i32
    return %arg0, %c0_i32 : i32, i32
  }
  func.func @transform_1(%arg0: i32) -> (i32, i32) {
    %c0_i32 = arith.constant 0 : i32
    %c0_i32_0 = arith.constant 0 : i32
    %c0_i32_1 = arith.constant 0 : i32
    return %c0_i32, %c0_i32_0 : i32, i32
  }
  func.func @transform_2(%arg0: i32) -> (i32, i32) {
    %c0_i32 = arith.constant 0 : i32
    %c0_i32_0 = arith.constant 0 : i32
    return %arg0, %c0_i32 : i32, i32
  }
}

</mosaic_0001>

<llo_original>
// kernel: tpu_custom_call.1
$region0: #{tpu_custom_call.1}
  #allocation0 [shape = 'u32[]', space=smem, size = 0x4, offset = 0x4, fixed_abs, tag = 'smem constant byte address 0x4 - core index']
  #allocation1 [shape = 'u32[144,128]{1,0:T(1,128)}', space=vmem, size = 0x12000, scoped, tag = 'internal scratch']
  %s0 = inlined_call_operand.hbm [shape: f32[8,144], index: 0, kind: input, shape index: {}]
  %s1 = inlined_call_operand.hbm [shape: f32[144,576], index: 1, kind: input, shape index: {}]
  %s2 = inlined_call_operand.hbm [shape: f32[8,576], index: 2, kind: output, shape index: {}]
  %s3 = sld [smem:[#allocation0]]
  $region26: #{tpu_custom_call.1} parent=0
    _
  %s5 = ssub.s32 1, %s3
  %s6 = scalar_select 0, %s5, %s3
  $region1: #{tpu_custom_call.1} parent=0
    #allocation2 [shape = 'u8[8192]{0}', space=vmem, size = 0x2000, scoped, tag = 'input window, operand 0, single buffered']
    #allocation3 [shape = 's32[1]{0}', space=sflag, size = 0x4, scoped, tag = 'scoped memory for tpu_custom_call.1']
    #allocation4 [shape = 's32[1]{0}', space=sflag, size = 0x4, scoped, tag = 'scoped memory for tpu_custom_call.1']
    #allocation5 [shape = 'u8[368640]{0}', space=vmem, size = 0x5a000, scoped, tag = 'input window, operand 1, single buffered']
    #allocation6 [shape = 's32[1]{0}', space=sflag, size = 0x4, scoped, tag = 'scoped memory for tpu_custom_call.1']
    #allocation7 [shape = 'u8[20480]{0}', space=vmem, size = 0x5000, scoped, tag = 'output window, operand 0, single buffered']
    %7 = vsyncpa [#allocation3], 0
    %8 = vsyncpa [#allocation6], 0
    %9 = vsyncpa [#allocation4], 0
    // Predicated region
    $region2: #{tpu_custom_call.1} parent=1 // pred_check
      _
    $region3: #{tpu_custom_call.1} parent=1 // pred_check_branch
      %11 = sbr.rel (0) target = $region5
    $region4: #{tpu_custom_call.1} parent=1 // pred_region
      %s13 = ssub.s32 256, 256
      %14 = vsyncadd [#allocation3], %s13
      %s16 = sshll.u32 [#allocation2], 4
      %s17 = int_to_ptr.vmem [resolvable:$true] %s16
      %19 = dma.hbm_to_vmem [thread:$0]  %s0, 256, %s17, [#allocation3]
    $region5: #{tpu_custom_call.1} parent=1 // pred_fallthru
      _
    // Predicated region
    $region6: #{tpu_custom_call.1} parent=1 // pred_check
      _
    $region7: #{tpu_custom_call.1} parent=1 // pred_check_branch
      %21 = sbr.rel (0) target = $region9
    $region8: #{tpu_custom_call.1} parent=1 // pred_region
      %s23 = ssub.s32 11520, 11520
      %24 = vsyncadd [#allocation6], %s23
      %s25 = sshll.u32 [#allocation5], 4
      %s26 = int_to_ptr.vmem [resolvable:$true] %s25
      %31 = dma.hbm_to_vmem [thread:$0]  %s1, 11520, %s26, [#allocation6], 640, 640, 40
    $region9: #{tpu_custom_call.1} parent=1 // pred_fallthru
      _
    // Predicated region
    $region10: #{tpu_custom_call.1} parent=1 // pred_check
      _
    $region11: #{tpu_custom_call.1} parent=1 // pred_check_branch
      %33 = sbr.rel (0) target = $region13
    $region12: #{tpu_custom_call.1} parent=1 // pred_region
      %34 = dma.done [#allocation3], 256
    $region13: #{tpu_custom_call.1} parent=1 // pred_fallthru
      _
    // Predicated region
    $region14: #{tpu_custom_call.1} parent=1 // pred_check
      _
    $region15: #{tpu_custom_call.1} parent=1 // pred_check_branch
      %36 = sbr.rel (0) target = $region17
    $region16: #{tpu_custom_call.1} parent=1 // pred_region
      %37 = dma.done [#allocation6], 11520
    $region17: #{tpu_custom_call.1} parent=1 // pred_fallthru
      _
    %v38 = vld [vmem:[#allocation5] sm:$0xff]
    %v39 = vld [vmem:[#allocation5 + $0x8] sm:$0xff]
    %v40 = vld [vmem:[#allocation5 + $0x10] sm:$0xff]
    %v41 = vld [vmem:[#allocation5 + $0x18] sm:$0xff]
    %v42 = vld [vmem:[#allocation5 + $0x20] sm:$0xff]
    %v43 = vld [vmem:[#allocation5 + $0x28] sm:$0xff]
    %v44 = vld [vmem:[#allocation5 + $0x30] sm:$0xff]
    %v45 = vld [vmem:[#allocation5 + $0x38] sm:$0xff]
    %v46 = vld [vmem:[#allocation5 + $0x40] sm:$0xff]
    %v47 = vld [vmem:[#allocation5 + $0x48] sm:$0xff]
    %v48 = vld [vmem:[#allocation5 + $0x50] sm:$0xff]
    %v49 = vld [vmem:[#allocation5 + $0x58] sm:$0xff]
    %v50 = vld [vmem:[#allocation5 + $0x60] sm:$0xff]
    %v51 = vld [vmem:[#allocation5 + $0x68] sm:$0xff]
    %v52 = vld [vmem:[#allocation5 + $0x70] sm:$0xff]
    %v53 = vld [vmem:[#allocation5 + $0x78] sm:$0xff]
    %v54 = vld [vmem:[#allocation5 + $0x80] sm:$0xff]
    %v55 = vld [vmem:[#allocation5 + $0x88] sm:$0xff]
    %v56 = vld [vmem:[#allocation5 + $0x90] sm:$0xff]
    %v57 = vld [vmem:[#allocation5 + $0x98] sm:$0xff]
    %v58 = vld [vmem:[#allocation5 + $0xa0] sm:$0xff]
    %v59 = vld [vmem:[#allocation5 + $0xa8] sm:$0xff]
    %v60 = vld [vmem:[#allocation5 + $0xb0] sm:$0xff]
    %v61 = vld [vmem:[#allocation5 + $0xb8] sm:$0xff]
    %v62 = vld [vmem:[#allocation5 + $0xc0] sm:$0xff]
    %v63 = vld [vmem:[#allocation5 + $0xc8] sm:$0xff]
    %v64 = vld [vmem:[#allocation5 + $0xd0] sm:$0xff]
    %v65 = vld [vmem:[#allocation5 + $0xd8] sm:$0xff]
    %v66 = vld [vmem:[#allocation5 + $0xe0] sm:$0xff]
    %v67 = vld [vmem:[#allocation5 + $0xe8] sm:$0xff]
    %v68 = vld [vmem:[#allocation5 + $0xf0] sm:$0xff]
    %v69 = vld [vmem:[#allocation5 + $0xf8] sm:$0xff]
    %v70 = vld [vmem:[#allocation5 + $0x100] sm:$0xff]
    %v71 = vld [vmem:[#allocation5 + $0x108] sm:$0xff]
    %v72 = vld [vmem:[#allocation5 + $0x110] sm:$0xff]
    %v73 = vld [vmem:[#allocation5 + $0x118] sm:$0xff]
    %v74 = vld [vmem:[#allocation5 + $0x120] sm:$0xff]
    %v75 = vld [vmem:[#allocation5 + $0x128] sm:$0xff]
    %v76 = vld [vmem:[#allocation5 + $0x130] sm:$0xff]
    %v77 = vld [vmem:[#allocation5 + $0x138] sm:$0xff]
    %v78 = vld [vmem:[#allocation5 + $0x140] sm:$0xff]
    %v79 = vld [vmem:[#allocation5 + $0x148] sm:$0xff]
    %v80 = vld [vmem:[#allocation5 + $0x150] sm:$0xff]
    %v81 = vld [vmem:[#allocation5 + $0x158] sm:$0xff]
    %v82 = vld [vmem:[#allocation5 + $0x160] sm:$0xff]
    %v83 = vld [vmem:[#allocation5 + $0x168] sm:$0xff]
    %v84 = vld [vmem:[#allocation5 + $0x170] sm:$0xff]
    %v85 = vld [vmem:[#allocation5 + $0x178] sm:$0xff]
    %v86 = vld [vmem:[#allocation5 + $0x180] sm:$0xff]
    %v87 = vld [vmem:[#allocation5 + $0x188] sm:$0xff]
    %v88 = vld [vmem:[#allocation5 + $0x190] sm:$0xff]
    %v89 = vld [vmem:[#allocation5 + $0x198] sm:$0xff]
    %v90 = vld [vmem:[#allocation5 + $0x1a0] sm:$0xff]
    %v91 = vld [vmem:[#allocation5 + $0x1a8] sm:$0xff]
    %v92 = vld [vmem:[#allocation5 + $0x1b0] sm:$0xff]
    %v93 = vld [vmem:[#allocation5 + $0x1b8] sm:$0xff]
    %v94 = vld [vmem:[#allocation5 + $0x1c0] sm:$0xff]
    %v95 = vld [vmem:[#allocation5 + $0x1c8] sm:$0xff]
    %v96 = vld [vmem:[#allocation5 + $0x1d0] sm:$0xff]
    %v97 = vld [vmem:[#allocation5 + $0x1d8] sm:$0xff]
    %v98 = vld [vmem:[#allocation5 + $0x1e0] sm:$0xff]
    %v99 = vld [vmem:[#allocation5 + $0x1e8] sm:$0xff]
    %v100 = vld [vmem:[#allocation5 + $0x1f0] sm:$0xff]
    %v101 = vld [vmem:[#allocation5 + $0x1f8] sm:$0xff]
    %v102 = vld [vmem:[#allocation5 + $0x200] sm:$0xff]
    %v103 = vld [vmem:[#allocation5 + $0x208] sm:$0xff]
    %v104 = vld [vmem:[#allocation5 + $0x210] sm:$0xff]
    %v105 = vld [vmem:[#allocation5 + $0x218] sm:$0xff]
    %v106 = vld [vmem:[#allocation5 + $0x220] sm:$0xff]
    %v107 = vld [vmem:[#allocation5 + $0x228] sm:$0xff]
    %v108 = vld [vmem:[#allocation5 + $0x230] sm:$0xff]
    %v109 = vld [vmem:[#allocation5 + $0x238] sm:$0xff]
    %v110 = vld [vmem:[#allocation5 + $0x240] sm:$0xff]
    %v111 = vld [vmem:[#allocation5 + $0x248] sm:$0xff]
    %v112 = vld [vmem:[#allocation5 + $0x250] sm:$0xff]
    %v113 = vld [vmem:[#allocation5 + $0x258] sm:$0xff]
    %v114 = vld [vmem:[#allocation5 + $0x260] sm:$0xff]
    %v115 = vld [vmem:[#allocation5 + $0x268] sm:$0xff]
    %v116 = vld [vmem:[#allocation5 + $0x270] sm:$0xff]
    %v117 = vld [vmem:[#allocation5 + $0x278] sm:$0xff]
    %v118 = vld [vmem:[#allocation5 + $0x280] sm:$0xff]
    %v119 = vld [vmem:[#allocation5 + $0x288] sm:$0xff]
    %v120 = vld [vmem:[#allocation5 + $0x290] sm:$0xff]
    %v121 = vld [vmem:[#allocation5 + $0x298] sm:$0xff]
    %v122 = vld [vmem:[#allocation5 + $0x2a0] sm:$0xff]
    %v123 = vld [vmem:[#allocation5 + $0x2a8] sm:$0xff]
    %v124 = vld [vmem:[#allocation5 + $0x2b0] sm:$0xff]
    %v125 = vld [vmem:[#allocation5 + $0x2b8] sm:$0xff]
    %v126 = vld [vmem:[#allocation5 + $0x2c0] sm:$0xff]
    %v127 = vld [vmem:[#allocation5 + $0x2c8] sm:$0xff]
    %v128 = vld [vmem:[#allocation2] sm:$0xff]
    %v129 = vld [vmem:[#allocation2 + $0x8] sm:$0xff]
    %vm130 = vcmask 130048
    %v132 = vsel %vm130, %v129, 0
    %134 = vmatprep.subr.mxu0 %v39
    %135 = vmatpush1.msra.mxu0 %v38
    %136 = vmatprep.subr.mxu0 %v44
    %137 = vmatpush1.msra.mxu0 %v43
    %138 = vmatprep.subr.mxu0 %v49
    %139 = vmatpush1.msra.mxu0 %v48
    %140 = vmatprep.subr.mxu0 %v54
    %141 = vmatpush1.msra.mxu0 %v53
    %142 = vmatprep.subr.mxu0 %v59
    %143 = vmatpush1.msra.mxu0 %v58
    %144 = vmatprep.subr.mxu0 %v64
    %145 = vmatpush1.msra.mxu0 %v63
    %146 = vmatprep.subr.mxu0 %v69
    %147 = vmatpush1.msra.mxu0 %v68
    %148 = vmatprep.subr.mxu0 %v74
    %149 = vmatpush1.msra.mxu0 %v73
    %150 = vmatprep.subr.mxu0 %v79
    %151 = vmatpush1.msra.mxu0 %v78
    %152 = vmatprep.subr.mxu0 %v84
    %153 = vmatpush1.msra.mxu0 %v83
    %154 = vmatprep.subr.mxu0 %v89
    %155 = vmatpush1.msra.mxu0 %v88
    %156 = vmatprep.subr.mxu0 %v94
    %157 = vmatpush1.msra.mxu0 %v93
    %158 = vmatprep.subr.mxu0 %v99
    %159 = vmatpush1.msra.mxu0 %v98
    %160 = vmatprep.subr.mxu0 %v104
    %161 = vmatpush1.msra.mxu0 %v103
    %162 = vmatprep.subr.mxu0 %v109
    %163 = vmatpush1.msra.mxu0 %v108
    %164 = vmatprep.subr.mxu0 %v114
    %165 = vmatpush1.msra.mxu0 %v113
    %166 = vmatprep.subr.mxu0 %v119
    %167 = vmatpush1.msra.mxu0 %v118
    %168 = vmatprep.subr.mxu0 %v124
    %169 = vmatpush1.msra.mxu0 %v123
    %170 = vmatprep.subr.mxu0 0.0
    %171 = vmatpush1.msra.mxu0 0.0
    %172 = vmatprep.subr.mxu0 0.0
    %173 = vmatpush1.msra.mxu0 0.0
    %174 = vmatprep.subr.mxu0 0.0
    %175 = vmatpush1.msra.mxu0 0.0
    %176 = vmatprep.subr.mxu0 0.0
    %177 = vmatpush1.msra.mxu0 0.0
    %178 = vmatprep.subr.mxu0 0.0
    %179 = vmatpush1.msra.mxu0 0.0
    %180 = vmatprep.subr.mxu0 0.0
    %181 = vmatpush1.msra.mxu0 0.0
    %182 = vmatprep.subr.mxu0 0.0
    %183 = vmatpush1.msra.mxu0 0.0
    %184 = vmatprep.subr.mxu0 0.0
    %185 = vmatpush1.msra.mxu0 0.0
    %186 = vmatprep.subr.mxu0 0.0
    %187 = vmatpush1.msra.mxu0 0.0
    %188 = vmatprep.subr.mxu0 0.0
    %189 = vmatpush1.msra.mxu0 0.0
    %190 = vmatprep.subr.mxu0 0.0
    %191 = vmatpush1.msra.mxu0 0.0
    %192 = vmatprep.subr.mxu0 0.0
    %193 = vmatpush1.msra.mxu0 0.0
    %194 = vmatprep.subr.mxu0 0.0
    %195 = vmatpush1.msra.mxu0 0.0
    %196 = vmatprep.subr.mxu0 0.0
    %197 = vmatpush1.msra.mxu0 0.0
    %198 = vmatprep.mubr.f32.mxu0 %v132
    %199 = vmatmul.mubr.f32.gmra.mrb[0].mxu0 %v128
    %v200 = vpop.f32.mrb[0].mxu0
    %v201 = vadd.f32 0.0, %v200
    %v202 = vpop.f32.mrb[0].mxu0
    %v203 = vadd.f32 0.0, %v202
    %204 = vdwg.mxu0
    %205 = vmatprep.subr.mxu0 %v41
    %206 = vmatpush1.msra.mxu0 %v40
    %207 = vmatprep.subr.mxu0 %v46
    %208 = vmatpush1.msra.mxu0 %v45
    %209 = vmatprep.subr.mxu0 %v51
    %210 = vmatpush1.msra.mxu0 %v50
    %211 = vmatprep.subr.mxu0 %v56
    %212 = vmatpush1.msra.mxu0 %v55
    %213 = vmatprep.subr.mxu0 %v61
    %214 = vmatpush1.msra.mxu0 %v60
    %215 = vmatprep.subr.mxu0 %v66
    %216 = vmatpush1.msra.mxu0 %v65
    %217 = vmatprep.subr.mxu0 %v71
    %218 = vmatpush1.msra.mxu0 %v70
    %219 = vmatprep.subr.mxu0 %v76
    %220 = vmatpush1.msra.mxu0 %v75
    %221 = vmatprep.subr.mxu0 %v81
    %222 = vmatpush1.msra.mxu0 %v80
    %223 = vmatprep.subr.mxu0 %v86
    %224 = vmatpush1.msra.mxu0 %v85
    %225 = vmatprep.subr.mxu0 %v91
    %226 = vmatpush1.msra.mxu0 %v90
    %227 = vmatprep.subr.mxu0 %v96
    %228 = vmatpush1.msra.mxu0 %v95
    %229 = vmatprep.subr.mxu0 %v101
    %230 = vmatpush1.msra.mxu0 %v100
    %231 = vmatprep.subr.mxu0 %v106
    %232 = vmatpush1.msra.mxu0 %v105
    %233 = vmatprep.subr.mxu0 %v111
    %234 = vmatpush1.msra.mxu0 %v110
    %235 = vmatprep.subr.mxu0 %v116
    %236 = vmatpush1.msra.mxu0 %v115
    %237 = vmatprep.subr.mxu0 %v121
    %238 = vmatpush1.msra.mxu0 %v120
    %239 = vmatprep.subr.mxu0 %v126
    %240 = vmatpush1.msra.mxu0 %v125
    %241 = vmatprep.subr.mxu0 0.0
    %242 = vmatpush1.msra.mxu0 0.0
    %243 = vmatprep.subr.mxu0 0.0
    %244 = vmatpush1.msra.mxu0 0.0
    %245 = vmatprep.subr.mxu0 0.0
    %246 = vmatpush1.msra.mxu0 0.0
    %247 = vmatprep.subr.mxu0 0.0
    %248 = vmatpush1.msra.mxu0 0.0
    %249 = vmatprep.subr.mxu0 0.0
    %250 = vmatpush1.msra.mxu0 0.0
    %251 = vmatprep.subr.mxu0 0.0
    %252 = vmatpush1.msra.mxu0 0.0
    %253 = vmatprep.subr.mxu0 0.0
    %254 = vmatpush1.msra.mxu0 0.0
    %255 = vmatprep.subr.mxu0 0.0
    %256 = vmatpush1.msra.mxu0 0.0
    %257 = vmatprep.subr.mxu0 0.0
    %258 = vmatpush1.msra.mxu0 0.0
    %259 = vmatprep.subr.mxu0 0.0
    %260 = vmatpush1.msra.mxu0 0.0
    %261 = vmatprep.subr.mxu0 0.0
    %262 = vmatpush1.msra.mxu0 0.0
    %263 = vmatprep.subr.mxu0 0.0
    %264 = vmatpush1.msra.mxu0 0.0
    %265 = vmatprep.subr.mxu0 0.0
    %266 = vmatpush1.msra.mxu0 0.0
    %267 = vmatprep.subr.mxu0 0.0
    %268 = vmatpush1.msra.mxu0 0.0
    %269 = vmatprep.mubr.f32.mxu0 %v132
    %270 = vmatmul.mubr.f32.gmra.mrb[0].mxu0 %v128
    %v271 = vpop.f32.mrb[0].mxu0
    %v272 = vadd.f32 0.0, %v271
    %v273 = vpop.f32.mrb[0].mxu0
    %v274 = vadd.f32 0.0, %v273
    %275 = vdwg.mxu0
    %276 = vmatprep.subr.mxu0 0.0
    %277 = vmatpush1.msra.mxu0 %v42
    %278 = vmatprep.subr.mxu0 0.0
    %279 = vmatpush1.msra.mxu0 %v47
    %280 = vmatprep.subr.mxu0 0.0
    %281 = vmatpush1.msra.mxu0 %v52
    %282 = vmatprep.subr.mxu0 0.0
    %283 = vmatpush1.msra.mxu0 %v57
    %284 = vmatprep.subr.mxu0 0.0
    %285 = vmatpush1.msra.mxu0 %v62
    %286 = vmatprep.subr.mxu0 0.0
    %287 = vmatpush1.msra.mxu0 %v67
    %288 = vmatprep.subr.mxu0 0.0
    %289 = vmatpush1.msra.mxu0 %v72
    %290 = vmatprep.subr.mxu0 0.0
    %291 = vmatpush1.msra.mxu0 %v77
    %292 = vmatprep.subr.mxu0 0.0
    %293 = vmatpush1.msra.mxu0 %v82
    %294 = vmatprep.subr.mxu0 0.0
    %295 = vmatpush1.msra.mxu0 %v87
    %296 = vmatprep.subr.mxu0 0.0
    %297 = vmatpush1.msra.mxu0 %v92
    %298 = vmatprep.subr.mxu0 0.0
    %299 = vmatpush1.msra.mxu0 %v97
    %300 = vmatprep.subr.mxu0 0.0
    %301 = vmatpush1.msra.mxu0 %v102
    %302 = vmatprep.subr.mxu0 0.0
    %303 = vmatpush1.msra.mxu0 %v107
    %304 = vmatprep.subr.mxu0 0.0
    %305 = vmatpush1.msra.mxu0 %v112
    %306 = vmatprep.subr.mxu0 0.0
    %307 = vmatpush1.msra.mxu0 %v117
    %308 = vmatprep.subr.mxu0 0.0
    %309 = vmatpush1.msra.mxu0 %v122
    %310 = vmatprep.subr.mxu0 0.0
    %311 = vmatpush1.msra.mxu0 %v127
    %312 = vmatprep.subr.mxu0 0.0
    %313 = vmatpush1.msra.mxu0 0.0
    %314 = vmatprep.subr.mxu0 0.0
    %315 = vmatpush1.msra.mxu0 0.0
    %316 = vmatprep.subr.mxu0 0.0
    %317 = vmatpush1.msra.mxu0 0.0
    %318 = vmatprep.subr.mxu0 0.0
    %319 = vmatpush1.msra.mxu0 0.0
    %320 = vmatprep.subr.mxu0 0.0
    %321 = vmatpush1.msra.mxu0 0.0
    %322 = vmatprep.subr.mxu0 0.0
    %323 = vmatpush1.msra.mxu0 0.0
    %324 = vmatprep.subr.mxu0 0.0
    %325 = vmatpush1.msra.mxu0 0.0
    %326 = vmatprep.subr.mxu0 0.0
    %327 = vmatpush1.msra.mxu0 0.0
    %328 = vmatprep.subr.mxu0 0.0
    %329 = vmatpush1.msra.mxu0 0.0
    %330 = vmatprep.subr.mxu0 0.0
    %331 = vmatpush1.msra.mxu0 0.0
    %332 = vmatprep.subr.mxu0 0.0
    %333 = vmatpush1.msra.mxu0 0.0
    %334 = vmatprep.subr.mxu0 0.0
    %335 = vmatpush1.msra.mxu0 0.0
    %336 = vmatprep.subr.mxu0 0.0
    %337 = vmatpush1.msra.mxu0 0.0
    %338 = vmatprep.subr.mxu0 0.0
    %339 = vmatpush1.msra.mxu0 0.0
    %340 = vmatprep.mubr.f32.mxu0 %v132
    %341 = vmatmul.mubr.f32.gmra.mrb[0].mxu0 %v128
    %v342 = vpop.f32.mrb[0].mxu0
    %v343 = vadd.f32 0.0, %v342
    %v344 = vpop.f32.mrb[0].mxu0
    %345 = vdwg.mxu0
    %346 = vst [vmem:[#allocation7] sm:$0xff] %v201
    %347 = vst [vmem:[#allocation7 + $0x8] sm:$0xff] %v203
    %348 = vst [vmem:[#allocation7 + $0x10] sm:$0xff] %v272
    %349 = vst [vmem:[#allocation7 + $0x18] sm:$0xff] %v274
    %vm350 = vcmask 523264
    %351 = vst.msk [vmem:[#allocation7 + $0x20] sm:$0xff] %vm350, %v343
    // Predicated region
    $region18: #{tpu_custom_call.1} parent=1 // pred_check
      _
    $region19: #{tpu_custom_call.1} parent=1 // pred_check_branch
      %353 = sbr.rel (0) target = $region21
    $region20: #{tpu_custom_call.1} parent=1 // pred_region
      %s355 = ssub.s32 640, 640
      %356 = vsyncadd [#allocation4], %s355
      %s358 = sshll.u32 [#allocation7], 4
      %s359 = int_to_ptr.vmem [resolvable:$true] %s358
      %361 = dma.vmem_to_hbm [thread:$0]  %s359, 640, %s2, [#allocation4]
    $region21: #{tpu_custom_call.1} parent=1 // pred_fallthru
      _
    // Predicated region
    $region22: #{tpu_custom_call.1} parent=1 // pred_check
      _
    $region23: #{tpu_custom_call.1} parent=1 // pred_check_branch
      %363 = sbr.rel (0) target = $region25
    $region24: #{tpu_custom_call.1} parent=1 // pred_region
      %364 = dma.done [#allocation4], 640
    $region25: #{tpu_custom_call.1} parent=1 // pred_fallthru
      _
    %365 = vsyncpa [#allocation3], 1
    %366 = vsyncpa [#allocation6], 1
    %367 = vsyncpa [#allocation4], 1

</llo_original>
